<compile_context>
chip_gen: v7x
topology: tpu7x:2x2x1
jax: 0.10.0
libtpu: 0.0.40
codegen_flags: <defaults>
</compile_context>

<pallas_src>
import jax
import jax.numpy as jnp
from jax.experimental import pallas as pl
from jax.experimental.pallas import tpu as pltpu


def _nearest_indices(out_size: int, in_size: int) -> jnp.ndarray:
    # PyTorch F.interpolate(mode='nearest') source index: floor(dst * in / out).
    # Integer form is exact for the module's power-of-two ratios (128/64/...).
    return (jnp.arange(out_size) * in_size) // out_size


def _resize_kernel(sel_row_ref, sel_col_ref, x_ref, o_ref):
    # sel_col: (w_in, w)        one-hot column gather (VMEM-resident)
    # sel_row: (B*h, B*h_in)    block-diagonal one-hot row gather (VMEM-resident)
    # x:       (B*h_in, w_in)   B stacked input planes
    # o:       (B*h, w)         B stacked output planes
    compute_dtype = sel_col_ref.dtype
    # Column gather for the whole block (one MXU matmul, K = w_in).
    y = jnp.dot(x_ref[...].astype(compute_dtype), sel_col_ref[...],
                preferred_element_type=jnp.float32).astype(compute_dtype)
    # Row gather for the whole block (one MXU matmul, K = B*h_in ~ 256).
    o_ref[...] = jnp.dot(sel_row_ref[...], y,
                         preferred_element_type=jnp.float32).astype(o_ref.dtype)


def _choose_planes_per_step(total, h_in, w_in, h, w, itemsize):
    """Pick B = planes per grid step.

    * Fill the MXU contraction dim (B*h_in ~= 256) -- this also bounds the
      block-diagonal row-gather redundancy and its O(B^2) VMEM footprint.
    * Keep double-buffered in+out blocks within a modest VMEM budget
      (lane dims pad to 128 in VMEM).
    * B must divide `total` (no masked remainder block) and keep the input
      block's sublane extent 8-aligned whenever the grid has > 1 step.
    * When there is enough work, prefer >= 4 grid steps (>= 2 blocks per v7x
      TensorCore and pipeline overlap on single-TC v5e/v6e); for tiny totals
      a single step is cheapest.
    """
    lane = 128
    mxu_cap = max(1, 256 // max(1, h_in))
    bytes_per_plane = 2 * itemsize * (h * max(w, lane) + h_in * max(w_in, lane))
    vmem_cap = max(1, (8 << 20) // bytes_per_plane)
    cap = max(1, min(total, mxu_cap, vmem_cap))

    def legal(b):
        return total % b == 0 and ((b * h_in) % 8 == 0 or b == total)

    uppers = []
    if total >= 32:                         # enough work: target >= 4 grid steps
        uppers.append(max(1, min(cap, total // 4)))
    uppers.append(cap)
    for upper in uppers:
        for b in range(upper, 0, -1):
            if legal(b):
                return b
    # Fallback: one grid step over the whole array (block == full dims, always legal).
    return total


def resize_forward(noised_and_cover, h=128, w=128, resize_ratio_down=0.5):
    """Equivalent of Resize.forward: nearest-downsample wm_imgs to
    (scaled_h, scaled_w), then nearest-upsample back to (h, w).  The cover
    image is passed through unchanged (clone is a no-op in functional JAX)."""
    wm_imgs, cover = noised_and_cover
    scaled_h = int(resize_ratio_down * h)
    scaled_w = int(resize_ratio_down * w)

    n, c, h_in, w_in = wm_imgs.shape
    total = n * c
    itemsize = jnp.dtype(wm_imgs.dtype).itemsize

    # Composite nearest index maps: input -> (scaled_h, scaled_w) -> (h, w).
    # Note: for pathological non-power-of-two ratios PyTorch's float-scale
    # rounding can differ by one index; exact for this module's 128/64 sizes.
    row_comp = _nearest_indices(scaled_h, h_in)[_nearest_indices(h, scaled_h)]  # (h,)
    col_comp = _nearest_indices(scaled_w, w_in)[_nearest_indices(w, scaled_w)]  # (w,)

    # Planes per grid step.
    B = _choose_planes_per_step(total, h_in, w_in, h, w, itemsize)
    num_blocks = pl.cdiv(total, B)

    # One-hot selection matrices (exact gather on the MXU).  bf16 when the
    # input is bf16 (entries are exactly 0/1, so this is bit-exact).
    compute_dtype = jnp.bfloat16 if wm_imgs.dtype == jnp.bfloat16 else jnp.float32
    sel_itemsize = jnp.dtype(compute_dtype).itemsize
    # Column gather: (w_in, w).
    sel_col = (jnp.arange(w_in)[:, None] == col_comp[None, :]).astype(compute_dtype)
    # Block-diagonal row gather: out row (b, r) selects input row (b, row_comp[r]).
    out_rows = jnp.arange(B * h)
    src_rows = (out_rows // h) * h_in + row_comp[out_rows % h]                  # (B*h,)
    sel_row = (src_rows[:, None] == jnp.arange(B * h_in)[None, :]).astype(compute_dtype)

    # Stack all planes along the sublane axis (free, row-major contiguous).
    x2d = wm_imgs.reshape(total * h_in, w_in)

    # VMEM budget (lane dims pad to 128) -> explicit scoped-VMEM limit so the
    # v5e 16 MiB default never constrains pipelining.
    def rup(x, m):
        return ((x + m - 1) // m) * m
    vmem_est = (
        2 * B * h_in * rup(w_in, 128) * itemsize            # input blocks (double-buffered)
        + 2 * B * h * rup(w, 128) * itemsize                # output blocks (double-buffered)
        + 2 * B * h * rup(B * h_in, 128) * sel_itemsize     # sel_row (resident)
        + 2 * rup(h_in, 8) * rup(w, 128) * sel_itemsize     # sel_col (resident)
    )
    vmem_limit = int(min(48 << 20, max(32 << 20, 2 * vmem_est)))

    cost = pl.CostEstimate(
        flops=2 * total * h_in * w_in * w + 2 * total * h * (B * h_in) * w,
        transcendentals=0,
        bytes_accessed=total * (h_in * w_in + h * w) * itemsize
        + (B * h * B * h_in + w_in * w) * sel_itemsize,
    )

    out2d = pl.pallas_call(
        _resize_kernel,
        out_shape=jax.ShapeDtypeStruct((total * h, w), wm_imgs.dtype),
        grid_spec=pltpu.PrefetchScalarGridSpec(
            num_scalar_prefetch=0,
            grid=(num_blocks,),
            in_specs=[
                pl.BlockSpec((B * h, B * h_in), lambda i: (0, 0)),   # sel_row (shared, resident)
                pl.BlockSpec((w_in, w), lambda i: (0, 0)),           # sel_col (shared, resident)
                pl.BlockSpec((B * h_in, w_in), lambda i: (i, 0)),    # B stacked input planes
            ],
            out_specs=pl.BlockSpec((B * h, w), lambda i: (i, 0)),    # B stacked output planes
        ),
        compiler_params=pltpu.CompilerParams(
            dimension_semantics=("parallel",),
            vmem_limit_bytes=vmem_limit,
        ),
        cost_estimate=cost,
    )(sel_row, sel_col, x2d)

    return [out2d.reshape(n, c, h, w), cover]


def _reference(wm_imgs, h=128, w=128, resize_ratio_down=0.5):
    sh, sw = int(resize_ratio_down * h), int(resize_ratio_down * w)
    h_in, w_in = wm_imgs.shape[2], wm_imgs.shape[3]
    rd = _nearest_indices(sh, h_in)
    cd = _nearest_indices(sw, w_in)
    ru = _nearest_indices(h, sh)
    cu = _nearest_indices(w, sw)
    return wm_imgs[:, :, rd[ru], :][:, :, :, cd[cu]]


if __name__ == "__main__":
    key = jax.random.PRNGKey(0)
    k1, k2, k3 = jax.random.split(key, 3)

    # Primary small test: batch=2, channels=4, spatial=16 (module output is 128x128).
    wm_imgs = jax.random.normal(k1, (2, 4, 16, 16), dtype=jnp.float32)
    cover = jax.random.normal(k2, (2, 4, 16, 16), dtype=jnp.float32)

    result = resize_forward([wm_imgs, cover])
    jax.block_until_ready(result)

    assert result[0].shape == (2, 4, 128, 128)
    assert jnp.array_equal(result[0], _reference(wm_imgs))
    assert jnp.array_equal(result[1], cover)

    # Secondary test: larger plane count -> multi-step grid (exercises the
    # >=4-grid-step / parallel-block path).
    wm_imgs2 = jax.random.normal(k3, (8, 4, 16, 16), dtype=jnp.float32)
    result2 = resize_forward([wm_imgs2, cover])
    jax.block_until_ready(result2)
    assert result2[0].shape == (8, 4, 128, 128)
    assert jnp.array_equal(result2[0], _reference(wm_imgs2))

    print("KERNEL_OK")
</pallas_src>

<mosaic_0001>
module attributes {stable_mosaic.version = 11 : i64} {
  func.func @_resize_kernel(%arg0: i32, %arg1: memref<1024x128xf32, #tpu.memory_space<vmem>>, %arg2: memref<16x128xf32, #tpu.memory_space<vmem>>, %arg3: memref<128x16xf32, #tpu.memory_space<vmem>>, %arg4: memref<1024x128xf32, #tpu.memory_space<vmem>>) attributes {dimension_semantics = [#tpu.dimension_semantics<parallel>], iteration_bounds = array<i64: 1>, scalar_prefetch = 0 : i64, scratch_operands = 0 : i64, tpu.core_type = #tpu.core_type<tc>, window_params = [{pipeline_mode = #tpu.pipeline_mode<synchronous>, transform_indices = @transform_0, window_bounds = array<i64: 1024, 128>}, {pipeline_mode = #tpu.pipeline_mode<synchronous>, transform_indices = @transform_1, window_bounds = array<i64: 16, 128>}, {transform_indices = @transform_2, window_bounds = array<i64: 128, 16>}, {transform_indices = @transform_3, window_bounds = array<i64: 1024, 128>}]} {
    %c0 = arith.constant 0 : index
    %c0_0 = arith.constant 0 : index
    %0 = vector.load %arg3[%c0, %c0_0] : memref<128x16xf32, #tpu.memory_space<vmem>>, vector<128x16xf32>
    %c0_1 = arith.constant 0 : index
    %c0_2 = arith.constant 0 : index
    %1 = vector.load %arg2[%c0_1, %c0_2] : memref<16x128xf32, #tpu.memory_space<vmem>>, vector<16x128xf32>
    %cst = arith.constant dense<0.000000e+00> : vector<128x128xf32>
    %2 = tpu.matmul %0, %1, %cst {dimension_numbers = #tpu.dot_dimension_numbers<[1], [0], [0], [1], [0, 0, 1, 1], [], []>} : vector<128x16xf32>, vector<16x128xf32>, vector<128x128xf32> -> vector<128x128xf32>
    %c0_3 = arith.constant 0 : index
    %c0_4 = arith.constant 0 : index
    %3 = vector.load %arg1[%c0_3, %c0_4] : memref<1024x128xf32, #tpu.memory_space<vmem>>, vector<1024x128xf32>
    %cst_5 = arith.constant dense<0.000000e+00> : vector<1024x128xf32>
    %4 = tpu.matmul %3, %2, %cst_5 {dimension_numbers = #tpu.dot_dimension_numbers<[1], [0], [0], [1], [0, 0, 1, 1], [], []>} : vector<1024x128xf32>, vector<128x128xf32>, vector<1024x128xf32> -> vector<1024x128xf32>
    %c0_6 = arith.constant 0 : index
    %c0_7 = arith.constant 0 : index
    %5 = vector.load %arg4[%c0_6, %c0_7] : memref<1024x128xf32, #tpu.memory_space<vmem>>, vector<1024x128xf32>
    tpu.vector_store %arg4[%c0_6, %c0_7], %4 {strides = array<i32>} : memref<1024x128xf32, #tpu.memory_space<vmem>>, vector<1024x128xf32>,
    return
  }
  func.func @transform_0(%arg0: i32) -> (i32, i32) {
    %c0_i32 = arith.constant 0 : i32
    %c0_i32_0 = arith.constant 0 : i32
    %c0_i32_1 = arith.constant 0 : i32
    return %c0_i32, %c0_i32_0 : i32, i32
  }
  func.func @transform_1(%arg0: i32) -> (i32, i32) {
    %c0_i32 = arith.constant 0 : i32
    %c0_i32_0 = arith.constant 0 : i32
    %c0_i32_1 = arith.constant 0 : i32
    return %c0_i32, %c0_i32_0 : i32, i32
  }
  func.func @transform_2(%arg0: i32) -> (i32, i32) {
    %c0_i32 = arith.constant 0 : i32
    %c0_i32_0 = arith.constant 0 : i32
    return %arg0, %c0_i32 : i32, i32
  }
  func.func @transform_3(%arg0: i32) -> (i32, i32) {
    %c0_i32 = arith.constant 0 : i32
    %c0_i32_0 = arith.constant 0 : i32
    return %arg0, %c0_i32 : i32, i32
  }
}

</mosaic_0001>

<llo_original>
// kernel: tpu_custom_call.1
$region0: #{tpu_custom_call.1}
  #allocation0 [shape = 'u32[]', space=smem, size = 0x4, offset = 0x4, fixed_abs, tag = 'smem constant byte address 0x4 - core index']
  #allocation1 [shape = 'u32[144,128]{1,0:T(1,128)}', space=vmem, size = 0x12000, scoped, tag = 'internal scratch']
  %s0 = inlined_call_operand.hbm [shape: f32[1024,128], index: 0, kind: input, shape index: {}]
  %s1 = inlined_call_operand.vmem [shape: f32[16,128], index: 1, kind: input, shape index: {}]
  %s2 = inlined_call_operand.vmem [shape: f32[128,16], index: 2, kind: input, shape index: {}]
  %s3 = inlined_call_operand.hbm [shape: f32[1024,128], index: 3, kind: output, shape index: {}]
  %s4 = sld [smem:[#allocation0]]
  $region26: #{tpu_custom_call.1} parent=0
    _
  %s6 = ssub.s32 1, %s4
  %s7 = scalar_select 0, %s6, %s4
  $region1: #{tpu_custom_call.1} parent=0
    #allocation2 [shape = 'u8[524288]{0}', space=vmem, size = 0x80000, scoped, tag = 'input window, operand 0, single buffered']
    #allocation3 [shape = 's32[1]{0}', space=sflag, size = 0x4, scoped, tag = 'scoped memory for tpu_custom_call.1']
    #allocation4 [shape = 's32[1]{0}', space=sflag, size = 0x4, scoped, tag = 'scoped memory for tpu_custom_call.1']
    #allocation5 [shape = 'u8[524288]{0}', space=vmem, size = 0x80000, scoped, tag = 'output window, operand 0, single buffered']
    %8 = vsyncpa [#allocation3], 0
    %9 = vsyncpa [#allocation4], 0
    // Predicated region
    $region2: #{tpu_custom_call.1} parent=1 // pred_check
      _
    $region3: #{tpu_custom_call.1} parent=1 // pred_check_branch
      %11 = sbr.rel (0) target = $region5
    $region4: #{tpu_custom_call.1} parent=1 // pred_region
      %s13 = ssub.s32 16384, 16384
      %14 = vsyncadd [#allocation3], %s13
      %s15 = sshll.u32 [#allocation2], 4
      %s16 = int_to_ptr.vmem [resolvable:$true] %s15
      %21 = dma.hbm_to_vmem [thread:$0]  %s0, 16384, %s16, [#allocation3], 128, 128, 8
    $region5: #{tpu_custom_call.1} parent=1 // pred_fallthru
      _
    // Predicated region
    $region6: #{tpu_custom_call.1} parent=1 // pred_check
      _
    $region7: #{tpu_custom_call.1} parent=1 // pred_check_branch
      %23 = sbr.rel (0) target = $region9
    $region8: #{tpu_custom_call.1} parent=1 // pred_region
      _
    $region9: #{tpu_custom_call.1} parent=1 // pred_fallthru
      _
    // Predicated region
    $region10: #{tpu_custom_call.1} parent=1 // pred_check
      _
    $region11: #{tpu_custom_call.1} parent=1 // pred_check_branch
      %25 = sbr.rel (0) target = $region13
    $region12: #{tpu_custom_call.1} parent=1 // pred_region
      _
    $region13: #{tpu_custom_call.1} parent=1 // pred_fallthru
      _
    // Predicated region
    $region14: #{tpu_custom_call.1} parent=1 // pred_check
      _
    $region15: #{tpu_custom_call.1} parent=1 // pred_check_branch
      %27 = sbr.rel (0) target = $region17
    $region16: #{tpu_custom_call.1} parent=1 // pred_region
      %28 = dma.done [#allocation3], 16384
    $region17: #{tpu_custom_call.1} parent=1 // pred_fallthru
      _
    %v29 = vld [vmem:[%s2] sm:$0xff]
    %v30 = vld [vmem:[%s2 + $0x8] sm:$0xff]
    %v31 = vld [vmem:[%s2 + $0x10] sm:$0xff]
    %v32 = vld [vmem:[%s2 + $0x18] sm:$0xff]
    %v33 = vld [vmem:[%s2 + $0x20] sm:$0xff]
    %v34 = vld [vmem:[%s2 + $0x28] sm:$0xff]
    %v35 = vld [vmem:[%s2 + $0x30] sm:$0xff]
    %v36 = vld [vmem:[%s2 + $0x38] sm:$0xff]
    %v37 = vld [vmem:[%s2 + $0x40] sm:$0xff]
    %v38 = vld [vmem:[%s2 + $0x48] sm:$0xff]
    %v39 = vld [vmem:[%s2 + $0x50] sm:$0xff]
    %v40 = vld [vmem:[%s2 + $0x58] sm:$0xff]
    %v41 = vld [vmem:[%s2 + $0x60] sm:$0xff]
    %v42 = vld [vmem:[%s2 + $0x68] sm:$0xff]
    %v43 = vld [vmem:[%s2 + $0x70] sm:$0xff]
    %v44 = vld [vmem:[%s2 + $0x78] sm:$0xff]
    %v45 = vld [vmem:[%s1] sm:$0xff]
    %v46 = vld [vmem:[%s1 + $0x8] sm:$0xff]
    %vm47 = vcmask 130048
    %v49 = vsel %vm47, %v29, 0
    %v52 = vsel %vm47, %v30, 0
    %v55 = vsel %vm47, %v31, 0
    %v58 = vsel %vm47, %v32, 0
    %v61 = vsel %vm47, %v33, 0
    %v64 = vsel %vm47, %v34, 0
    %v67 = vsel %vm47, %v35, 0
    %v70 = vsel %vm47, %v36, 0
    %v73 = vsel %vm47, %v37, 0
    %v76 = vsel %vm47, %v38, 0
    %v79 = vsel %vm47, %v39, 0
    %v82 = vsel %vm47, %v40, 0
    %v85 = vsel %vm47, %v41, 0
    %v88 = vsel %vm47, %v42, 0
    %v91 = vsel %vm47, %v43, 0
    %v94 = vsel %vm47, %v44, 0
    %96 = vmatprep.subr.mxu0 0.0
    %97 = vmatpush1.msra.mxu0 %v45
    %98 = vmatprep.subr.mxu0 0.0
    %99 = vmatpush1.msra.mxu0 %v46
    %100 = vmatprep.subr.mxu0 0.0
    %101 = vmatpush1.msra.mxu0 0.0
    %102 = vmatprep.subr.mxu0 0.0
    %103 = vmatpush1.msra.mxu0 0.0
    %104 = vmatprep.subr.mxu0 0.0
    %105 = vmatpush1.msra.mxu0 0.0
    %106 = vmatprep.subr.mxu0 0.0
    %107 = vmatpush1.msra.mxu0 0.0
    %108 = vmatprep.subr.mxu0 0.0
    %109 = vmatpush1.msra.mxu0 0.0
    %110 = vmatprep.subr.mxu0 0.0
    %111 = vmatpush1.msra.mxu0 0.0
    %112 = vmatprep.subr.mxu0 0.0
    %113 = vmatpush1.msra.mxu0 0.0
    %114 = vmatprep.subr.mxu0 0.0
    %115 = vmatpush1.msra.mxu0 0.0
    %116 = vmatprep.subr.mxu0 0.0
    %117 = vmatpush1.msra.mxu0 0.0
    %118 = vmatprep.subr.mxu0 0.0
    %119 = vmatpush1.msra.mxu0 0.0
    %120 = vmatprep.subr.mxu0 0.0
    %121 = vmatpush1.msra.mxu0 0.0
    %122 = vmatprep.subr.mxu0 0.0
    %123 = vmatpush1.msra.mxu0 0.0
    %124 = vmatprep.subr.mxu0 0.0
    %125 = vmatpush1.msra.mxu0 0.0
    %126 = vmatprep.subr.mxu0 0.0
    %127 = vmatpush1.msra.mxu0 0.0
    %128 = vmatprep.subr.mxu0 0.0
    %129 = vmatpush1.msra.mxu0 0.0
    %130 = vmatprep.subr.mxu0 0.0
    %131 = vmatpush1.msra.mxu0 0.0
    %132 = vmatprep.subr.mxu0 0.0
    %133 = vmatpush1.msra.mxu0 0.0
    %134 = vmatprep.subr.mxu0 0.0
    %135 = vmatpush1.msra.mxu0 0.0
    %136 = vmatprep.subr.mxu0 0.0
    %137 = vmatpush1.msra.mxu0 0.0
    %138 = vmatprep.subr.mxu0 0.0
    %139 = vmatpush1.msra.mxu0 0.0
    %140 = vmatprep.subr.mxu0 0.0
    %141 = vmatpush1.msra.mxu0 0.0
    %142 = vmatprep.subr.mxu0 0.0
    %143 = vmatpush1.msra.mxu0 0.0
    %144 = vmatprep.subr.mxu0 0.0
    %145 = vmatpush1.msra.mxu0 0.0
    %146 = vmatprep.subr.mxu0 0.0
    %147 = vmatpush1.msra.mxu0 0.0
    %148 = vmatprep.subr.mxu0 0.0
    %149 = vmatpush1.msra.mxu0 0.0
    %150 = vmatprep.subr.mxu0 0.0
    %151 = vmatpush1.msra.mxu0 0.0
    %152 = vmatprep.subr.mxu0 0.0
    %153 = vmatpush1.msra.mxu0 0.0
    %154 = vmatprep.subr.mxu0 0.0
    %155 = vmatpush1.msra.mxu0 0.0
    %156 = vmatprep.subr.mxu0 0.0
    %157 = vmatpush1.msra.mxu0 0.0
    %158 = vmatprep.subr.mxu0 0.0
    %159 = vmatpush1.msra.mxu0 0.0
    %160 = vmatprep.mubr.f32.mxu0 0.0
    %161 = vmatmul.mubr.f32.gmra.mrb[0].mxu0 %v49
    %v162 = vpop.f32.mrb[0].mxu0
    %v163 = vadd.f32 0.0, %v162
    %v164 = vpop.f32.mrb[0].mxu0
    %165 = vmatprep.mubr.f32.mxu0 0.0
    %166 = vmatmul.mubr.f32.gmra.mrb[0].mxu0 %v52
    %v167 = vpop.f32.mrb[0].mxu0
    %v168 = vadd.f32 0.0, %v167
    %v169 = vpop.f32.mrb[0].mxu0
    %170 = vmatprep.mubr.f32.mxu0 0.0
    %171 = vmatmul.mubr.f32.gmra.mrb[0].mxu0 %v55
    %v172 = vpop.f32.mrb[0].mxu0
    %v173 = vadd.f32 0.0, %v172
    %v174 = vpop.f32.mrb[0].mxu0
    %175 = vmatprep.mubr.f32.mxu0 0.0
    %176 = vmatmul.mubr.f32.gmra.mrb[0].mxu0 %v58
    %v177 = vpop.f32.mrb[0].mxu0
    %v178 = vadd.f32 0.0, %v177
    %v179 = vpop.f32.mrb[0].mxu0
    %180 = vmatprep.mubr.f32.mxu0 0.0
    %181 = vmatmul.mubr.f32.gmra.mrb[0].mxu0 %v61
    %v182 = vpop.f32.mrb[0].mxu0
    %v183 = vadd.f32 0.0, %v182
    %v184 = vpop.f32.mrb[0].mxu0
    %185 = vmatprep.mubr.f32.mxu0 0.0
    %186 = vmatmul.mubr.f32.gmra.mrb[0].mxu0 %v64
    %v187 = vpop.f32.mrb[0].mxu0
    %v188 = vadd.f32 0.0, %v187
    %v189 = vpop.f32.mrb[0].mxu0
    %190 = vmatprep.mubr.f32.mxu0 0.0
    %191 = vmatmul.mubr.f32.gmra.mrb[0].mxu0 %v67
    %v192 = vpop.f32.mrb[0].mxu0
    %v193 = vadd.f32 0.0, %v192
    %v194 = vpop.f32.mrb[0].mxu0
    %195 = vmatprep.mubr.f32.mxu0 0.0
    %196 = vmatmul.mubr.f32.gmra.mrb[0].mxu0 %v70
    %v197 = vpop.f32.mrb[0].mxu0
    %v198 = vadd.f32 0.0, %v197
    %v199 = vpop.f32.mrb[0].mxu0
    %200 = vmatprep.mubr.f32.mxu0 0.0
    %201 = vmatmul.mubr.f32.gmra.mrb[0].mxu0 %v73
    %v202 = vpop.f32.mrb[0].mxu0
    %v203 = vadd.f32 0.0, %v202
    %v204 = vpop.f32.mrb[0].mxu0
    %205 = vmatprep.mubr.f32.mxu0 0.0
    %206 = vmatmul.mubr.f32.gmra.mrb[0].mxu0 %v76
    %v207 = vpop.f32.mrb[0].mxu0
    %v208 = vadd.f32 0.0, %v207
    %v209 = vpop.f32.mrb[0].mxu0
    %210 = vmatprep.mubr.f32.mxu0 0.0
    %211 = vmatmul.mubr.f32.gmra.mrb[0].mxu0 %v79
    %v212 = vpop.f32.mrb[0].mxu0
    %v213 = vadd.f32 0.0, %v212
    %v214 = vpop.f32.mrb[0].mxu0
    %215 = vmatprep.mubr.f32.mxu0 0.0
    %216 = vmatmul.mubr.f32.gmra.mrb[0].mxu0 %v82
    %v217 = vpop.f32.mrb[0].mxu0
    %v218 = vadd.f32 0.0, %v217
    %v219 = vpop.f32.mrb[0].mxu0
    %220 = vmatprep.mubr.f32.mxu0 0.0
    %221 = vmatmul.mubr.f32.gmra.mrb[0].mxu0 %v85
    %v222 = vpop.f32.mrb[0].mxu0
    %v223 = vadd.f32 0.0, %v222
    %v224 = vpop.f32.mrb[0].mxu0
    %225 = vmatprep.mubr.f32.mxu0 0.0
    %226 = vmatmul.mubr.f32.gmra.mrb[0].mxu0 %v88
    %v227 = vpop.f32.mrb[0].mxu0
    %v228 = vadd.f32 0.0, %v227
    %v229 = vpop.f32.mrb[0].mxu0
    %230 = vmatprep.mubr.f32.mxu0 0.0
    %231 = vmatmul.mubr.f32.gmra.mrb[0].mxu0 %v91
    %v232 = vpop.f32.mrb[0].mxu0
    %v233 = vadd.f32 0.0, %v232
    %v234 = vpop.f32.mrb[0].mxu0
    %235 = vmatprep.mubr.f32.mxu0 0.0
    %236 = vmatmul.mubr.f32.gmra.mrb[0].mxu0 %v94
    %v237 = vpop.f32.mrb[0].mxu0
    %v238 = vadd.f32 0.0, %v237
    %v239 = vpop.f32.mrb[0].mxu0
    %240 = vdwg.mxu0
    %v241 = vld [vmem:[#allocation2] sm:$0xff]
    %v242 = vld [vmem:[#allocation2 + $0x8] sm:$0xff]
    %v243 = vld [vmem:[#allocation2 + $0x10] sm:$0xff]
    %v244 = vld [vmem:[#allocation2 + $0x18] sm:$0xff]
    %v245 = vld [vmem:[#allocation2 + $0x20] sm:$0xff]
    %v246 = vld [vmem:[#allocation2 + $0x28] sm:$0xff]
    %v247 = vld [vmem:[#allocation2 + $0x30] sm:$0xff]
    %v248 = vld [vmem:[#allocation2 + $0x38] sm:$0xff]
    %v249 = vld [vmem:[#allocation2 + $0x40] sm:$0xff]
    %v250 = vld [vmem:[#allocation2 + $0x48] sm:$0xff]
    %v251 = vld [vmem:[#allocation2 + $0x50] sm:$0xff]
    %v252 = vld [vmem:[#allocation2 + $0x58] sm:$0xff]
    %v253 = vld [vmem:[#allocation2 + $0x60] sm:$0xff]
    %v254 = vld [vmem:[#allocation2 + $0x68] sm:$0xff]
    %v255 = vld [vmem:[#allocation2 + $0x70] sm:$0xff]
    %v256 = vld [vmem:[#allocation2 + $0x78] sm:$0xff]
    %v257 = vld [vmem:[#allocation2 + $0x80] sm:$0xff]
    %v258 = vld [vmem:[#allocation2 + $0x88] sm:$0xff]
    %v259 = vld [vmem:[#allocation2 + $0x90] sm:$0xff]
    %v260 = vld [vmem:[#allocation2 + $0x98] sm:$0xff]
    %v261 = vld [vmem:[#allocation2 + $0xa0] sm:$0xff]
    %v262 = vld [vmem:[#allocation2 + $0xa8] sm:$0xff]
    %v263 = vld [vmem:[#allocation2 + $0xb0] sm:$0xff]
    %v264 = vld [vmem:[#allocation2 + $0xb8] sm:$0xff]
    %v265 = vld [vmem:[#allocation2 + $0xc0] sm:$0xff]
    %v266 = vld [vmem:[#allocation2 + $0xc8] sm:$0xff]
    %v267 = vld [vmem:[#allocation2 + $0xd0] sm:$0xff]
    %v268 = vld [vmem:[#allocation2 + $0xd8] sm:$0xff]
    %v269 = vld [vmem:[#allocation2 + $0xe0] sm:$0xff]
    %v270 = vld [vmem:[#allocation2 + $0xe8] sm:$0xff]
    %v271 = vld [vmem:[#allocation2 + $0xf0] sm:$0xff]
    %v272 = vld [vmem:[#allocation2 + $0xf8] sm:$0xff]
    %v273 = vld [vmem:[#allocation2 + $0x100] sm:$0xff]
    %v274 = vld [vmem:[#allocation2 + $0x108] sm:$0xff]
    %v275 = vld [vmem:[#allocation2 + $0x110] sm:$0xff]
    %v276 = vld [vmem:[#allocation2 + $0x118] sm:$0xff]
    %v277 = vld [vmem:[#allocation2 + $0x120] sm:$0xff]
    %v278 = vld [vmem:[#allocation2 + $0x128] sm:$0xff]
    %v279 = vld [vmem:[#allocation2 + $0x130] sm:$0xff]
    %v280 = vld [vmem:[#allocation2 + $0x138] sm:$0xff]
    %v281 = vld [vmem:[#allocation2 + $0x140] sm:$0xff]
    %v282 = vld [vmem:[#allocation2 + $0x148] sm:$0xff]
    %v283 = vld [vmem:[#allocation2 + $0x150] sm:$0xff]
    %v284 = vld [vmem:[#allocation2 + $0x158] sm:$0xff]
    %v285 = vld [vmem:[#allocation2 + $0x160] sm:$0xff]
    %v286 = vld [vmem:[#allocation2 + $0x168] sm:$0xff]
    %v287 = vld [vmem:[#allocation2 + $0x170] sm:$0xff]
    %v288 = vld [vmem:[#allocation2 + $0x178] sm:$0xff]
    %v289 = vld [vmem:[#allocation2 + $0x180] sm:$0xff]
    %v290 = vld [vmem:[#allocation2 + $0x188] sm:$0xff]
    %v291 = vld [vmem:[#allocation2 + $0x190] sm:$0xff]
    %v292 = vld [vmem:[#allocation2 + $0x198] sm:$0xff]
    %v293 = vld [vmem:[#allocation2 + $0x1a0] sm:$0xff]
    %v294 = vld [vmem:[#allocation2 + $0x1a8] sm:$0xff]
    %v295 = vld [vmem:[#allocation2 + $0x1b0] sm:$0xff]
    %v296 = vld [vmem:[#allocation2 + $0x1b8] sm:$0xff]
    %v297 = vld [vmem:[#allocation2 + $0x1c0] sm:$0xff]
    %v298 = vld [vmem:[#allocation2 + $0x1c8] sm:$0xff]
    %v299 = vld [vmem:[#allocation2 + $0x1d0] sm:$0xff]
    %v300 = vld [vmem:[#allocation2 + $0x1d8] sm:$0xff]
    %v301 = vld [vmem:[#allocation2 + $0x1e0] sm:$0xff]
    %v302 = vld [vmem:[#allocation2 + $0x1e8] sm:$0xff]
    %v303 = vld [vmem:[#allocation2 + $0x1f0] sm:$0xff]
    %v304 = vld [vmem:[#allocation2 + $0x1f8] sm:$0xff]
    %v305 = vld [vmem:[#allocation2 + $0x200] sm:$0xff]
    %v306 = vld [vmem:[#allocation2 + $0x208] sm:$0xff]
    %v307 = vld [vmem:[#allocation2 + $0x210] sm:$0xff]
    %v308 = vld [vmem:[#allocation2 + $0x218] sm:$0xff]
    %v309 = vld [vmem:[#allocation2 + $0x220] sm:$0xff]
    %v310 = vld [vmem:[#allocation2 + $0x228] sm:$0xff]
    %v311 = vld [vmem:[#allocation2 + $0x230] sm:$0xff]
    %v312 = vld [vmem:[#allocation2 + $0x238] sm:$0xff]
    %v313 = vld [vmem:[#allocation2 + $0x240] sm:$0xff]
    %v314 = vld [vmem:[#allocation2 + $0x248] sm:$0xff]
    %v315 = vld [vmem:[#allocation2 + $0x250] sm:$0xff]
    %v316 = vld [vmem:[#allocation2 + $0x258] sm:$0xff]
    %v317 = vld [vmem:[#allocation2 + $0x260] sm:$0xff]
    %v318 = vld [vmem:[#allocation2 + $0x268] sm:$0xff]
    %v319 = vld [vmem:[#allocation2 + $0x270] sm:$0xff]
    %v320 = vld [vmem:[#allocation2 + $0x278] sm:$0xff]
    %v321 = vld [vmem:[#allocation2 + $0x280] sm:$0xff]
    %v322 = vld [vmem:[#allocation2 + $0x288] sm:$0xff]
    %v323 = vld [vmem:[#allocation2 + $0x290] sm:$0xff]
    %v324 = vld [vmem:[#allocation2 + $0x298] sm:$0xff]
    %v325 = vld [vmem:[#allocation2 + $0x2a0] sm:$0xff]
    %v326 = vld [vmem:[#allocation2 + $0x2a8] sm:$0xff]
    %v327 = vld [vmem:[#allocation2 + $0x2b0] sm:$0xff]
    %v328 = vld [vmem:[#allocation2 + $0x2b8] sm:$0xff]
    %v329 = vld [vmem:[#allocation2 + $0x2c0] sm:$0xff]
    %v330 = vld [vmem:[#allocation2 + $0x2c8] sm:$0xff]
    %v331 = vld [vmem:[#allocation2 + $0x2d0] sm:$0xff]
    %v332 = vld [vmem:[#allocation2 + $0x2d8] sm:$0xff]
    %v333 = vld [vmem:[#allocation2 + $0x2e0] sm:$0xff]
    %v334 = vld [vmem:[#allocation2 + $0x2e8] sm:$0xff]
    %v335 = vld [vmem:[#allocation2 + $0x2f0] sm:$0xff]
    %v336 = vld [vmem:[#allocation2 + $0x2f8] sm:$0xff]
    %v337 = vld [vmem:[#allocation2 + $0x300] sm:$0xff]
    %v338 = vld [vmem:[#allocation2 + $0x308] sm:$0xff]
    %v339 = vld [vmem:[#allocation2 + $0x310] sm:$0xff]
    %v340 = vld [vmem:[#allocation2 + $0x318] sm:$0xff]
    %v341 = vld [vmem:[#allocation2 + $0x320] sm:$0xff]
    %v342 = vld [vmem:[#allocation2 + $0x328] sm:$0xff]
    %v343 = vld [vmem:[#allocation2 + $0x330] sm:$0xff]
    %v344 = vld [vmem:[#allocation2 + $0x338] sm:$0xff]
    %v345 = vld [vmem:[#allocation2 + $0x340] sm:$0xff]
    %v346 = vld [vmem:[#allocation2 + $0x348] sm:$0xff]
    %v347 = vld [vmem:[#allocation2 + $0x350] sm:$0xff]
    %v348 = vld [vmem:[#allocation2 + $0x358] sm:$0xff]
    %v349 = vld [vmem:[#allocation2 + $0x360] sm:$0xff]
    %v350 = vld [vmem:[#allocation2 + $0x368] sm:$0xff]
    %v351 = vld [vmem:[#allocation2 + $0x370] sm:$0xff]
    %v352 = vld [vmem:[#allocation2 + $0x378] sm:$0xff]
    %v353 = vld [vmem:[#allocation2 + $0x380] sm:$0xff]
    %v354 = vld [vmem:[#allocation2 + $0x388] sm:$0xff]
    %v355 = vld [vmem:[#allocation2 + $0x390] sm:$0xff]
    %v356 = vld [vmem:[#allocation2 + $0x398] sm:$0xff]
    %v357 = vld [vmem:[#allocation2 + $0x3a0] sm:$0xff]
    %v358 = vld [vmem:[#allocation2 + $0x3a8] sm:$0xff]
    %v359 = vld [vmem:[#allocation2 + $0x3b0] sm:$0xff]
    %v360 = vld [vmem:[#allocation2 + $0x3b8] sm:$0xff]
    %v361 = vld [vmem:[#allocation2 + $0x3c0] sm:$0xff]
    %v362 = vld [vmem:[#allocation2 + $0x3c8] sm:$0xff]
    %v363 = vld [vmem:[#allocation2 + $0x3d0] sm:$0xff]
    %v364 = vld [vmem:[#allocation2 + $0x3d8] sm:$0xff]
    %v365 = vld [vmem:[#allocation2 + $0x3e0] sm:$0xff]
    %v366 = vld [vmem:[#allocation2 + $0x3e8] sm:$0xff]
    %v367 = vld [vmem:[#allocation2 + $0x3f0] sm:$0xff]
    %v368 = vld [vmem:[#allocation2 + $0x3f8] sm:$0xff]
    %369 = vmatprep.subr.mxu0 0.0
    %370 = vmatpush1.msra.mxu0 %v163
    %371 = vmatprep.subr.mxu0 0.0
    %372 = vmatpush1.msra.mxu0 %v168
    %373 = vmatprep.subr.mxu0 0.0
    %374 = vmatpush1.msra.mxu0 %v173
    %375 = vmatprep.subr.mxu0 0.0
    %376 = vmatpush1.msra.mxu0 %v178
    %377 = vmatprep.subr.mxu0 0.0
    %378 = vmatpush1.msra.mxu0 %v183
    %379 = vmatprep.subr.mxu0 0.0
    %380 = vmatpush1.msra.mxu0 %v188
    %381 = vmatprep.subr.mxu0 0.0
    %382 = vmatpush1.msra.mxu0 %v193
    %383 = vmatprep.subr.mxu0 0.0
    %384 = vmatpush1.msra.mxu0 %v198
    %385 = vmatprep.subr.mxu0 0.0
    %386 = vmatpush1.msra.mxu0 %v203
    %387 = vmatprep.subr.mxu0 0.0
    %388 = vmatpush1.msra.mxu0 %v208
    %389 = vmatprep.subr.mxu0 0.0
    %390 = vmatpush1.msra.mxu0 %v213
    %391 = vmatprep.subr.mxu0 0.0
    %392 = vmatpush1.msra.mxu0 %v218
    %393 = vmatprep.subr.mxu0 0.0
    %394 = vmatpush1.msra.mxu0 %v223
    %395 = vmatprep.subr.mxu0 0.0
    %396 = vmatpush1.msra.mxu0 %v228
    %397 = vmatprep.subr.mxu0 0.0
    %398 = vmatpush1.msra.mxu0 %v233
    %399 = vmatprep.subr.mxu0 0.0
    %400 = vmatpush1.msra.mxu0 %v238
    %401 = vmatprep.subr.mxu0 0.0
    %402 = vmatpush1.msra.mxu0 0.0
    %403 = vmatprep.subr.mxu0 0.0
    %404 = vmatpush1.msra.mxu0 0.0
    %405 = vmatprep.subr.mxu0 0.0
    %406 = vmatpush1.msra.mxu0 0.0
    %407 = vmatprep.subr.mxu0 0.0
    %408 = vmatpush1.msra.mxu0 0.0
    %409 = vmatprep.subr.mxu0 0.0
    %410 = vmatpush1.msra.mxu0 0.0
    %411 = vmatprep.subr.mxu0 0.0
    %412 = vmatpush1.msra.mxu0 0.0
    %413 = vmatprep.subr.mxu0 0.0
    %414 = vmatpush1.msra.mxu0 0.0
    %415 = vmatprep.subr.mxu0 0.0
    %416 = vmatpush1.msra.mxu0 0.0
    %417 = vmatprep.subr.mxu0 0.0
    %418 = vmatpush1.msra.mxu0 0.0
    %419 = vmatprep.subr.mxu0 0.0
    %420 = vmatpush1.msra.mxu0 0.0
    %421 = vmatprep.subr.mxu0 0.0
    %422 = vmatpush1.msra.mxu0 0.0
    %423 = vmatprep.subr.mxu0 0.0
    %424 = vmatpush1.msra.mxu0 0.0
    %425 = vmatprep.subr.mxu0 0.0
    %426 = vmatpush1.msra.mxu0 0.0
    %427 = vmatprep.subr.mxu0 0.0
    %428 = vmatpush1.msra.mxu0 0.0
    %429 = vmatprep.subr.mxu0 0.0
    %430 = vmatpush1.msra.mxu0 0.0
    %431 = vmatprep.subr.mxu0 0.0
    %432 = vmatpush1.msra.mxu0 0.0
    %433 = vmatprep.mubr.f32.mxu0 0.0
    %434 = vmatmul.mubr.f32.gmra.mrb[0].mxu0 %v241
    %v435 = vpop.f32.mrb[0].mxu0
    %v436 = vadd.f32 0.0, %v435
    %v437 = vpop.f32.mrb[0].mxu0
    %438 = vmatprep.mubr.f32.mxu0 0.0
    %439 = vmatmul.mubr.f32.gmra.mrb[0].mxu0 %v242
    %v440 = vpop.f32.mrb[0].mxu0
    %v441 = vadd.f32 0.0, %v440
    %v442 = vpop.f32.mrb[0].mxu0
    %443 = vmatprep.mubr.f32.mxu0 0.0
    %444 = vmatmul.mubr.f32.gmra.mrb[0].mxu0 %v243
    %v445 = vpop.f32.mrb[0].mxu0
    %v446 = vadd.f32 0.0, %v445
    %v447 = vpop.f32.mrb[0].mxu0
    %448 = vmatprep.mubr.f32.mxu0 0.0
    %449 = vmatmul.mubr.f32.gmra.mrb[0].mxu0 %v244
    %v450 = vpop.f32.mrb[0].mxu0
    %v451 = vadd.f32 0.0, %v450
    %v452 = vpop.f32.mrb[0].mxu0
    %453 = vmatprep.mubr.f32.mxu0 0.0
    %454 = vmatmul.mubr.f32.gmra.mrb[0].mxu0 %v245
    %v455 = vpop.f32.mrb[0].mxu0
    %v456 = vadd.f32 0.0, %v455
    %v457 = vpop.f32.mrb[0].mxu0
    %458 = vmatprep.mubr.f32.mxu0 0.0
    %459 = vmatmul.mubr.f32.gmra.mrb[0].mxu0 %v246
    %v460 = vpop.f32.mrb[0].mxu0
    %v461 = vadd.f32 0.0, %v460
    %v462 = vpop.f32.mrb[0].mxu0
    %463 = vmatprep.mubr.f32.mxu0 0.0
    %464 = vmatmul.mubr.f32.gmra.mrb[0].mxu0 %v247
    %v465 = vpop.f32.mrb[0].mxu0
    %v466 = vadd.f32 0.0, %v465
    %v467 = vpop.f32.mrb[0].mxu0
    %468 = vmatprep.mubr.f32.mxu0 0.0
    %469 = vmatmul.mubr.f32.gmra.mrb[0].mxu0 %v248
    %v470 = vpop.f32.mrb[0].mxu0
    %v471 = vadd.f32 0.0, %v470
    %v472 = vpop.f32.mrb[0].mxu0
    %473 = vmatprep.mubr.f32.mxu0 0.0
    %474 = vmatmul.mubr.f32.gmra.mrb[0].mxu0 %v249
    %v475 = vpop.f32.mrb[0].mxu0
    %v476 = vadd.f32 0.0, %v475
    %v477 = vpop.f32.mrb[0].mxu0
    %478 = vmatprep.mubr.f32.mxu0 0.0
    %479 = vmatmul.mubr.f32.gmra.mrb[0].mxu0 %v250
    %v480 = vpop.f32.mrb[0].mxu0
    %v481 = vadd.f32 0.0, %v480
    %v482 = vpop.f32.mrb[0].mxu0
    %483 = vmatprep.mubr.f32.mxu0 0.0
    %484 = vmatmul.mubr.f32.gmra.mrb[0].mxu0 %v251
    %v485 = vpop.f32.mrb[0].mxu0
    %v486 = vadd.f32 0.0, %v485
    %v487 = vpop.f32.mrb[0].mxu0
    %488 = vmatprep.mubr.f32.mxu0 0.0
    %489 = vmatmul.mubr.f32.gmra.mrb[0].mxu0 %v252
    %v490 = vpop.f32.mrb[0].mxu0
    %v491 = vadd.f32 0.0, %v490
    %v492 = vpop.f32.mrb[0].mxu0
    %493 = vmatprep.mubr.f32.mxu0 0.0
    %494 = vmatmul.mubr.f32.gmra.mrb[0].mxu0 %v253
    %v495 = vpop.f32.mrb[0].mxu0
    %v496 = vadd.f32 0.0, %v495
    %v497 = vpop.f32.mrb[0].mxu0
    %498 = vmatprep.mubr.f32.mxu0 0.0
    %499 = vmatmul.mubr.f32.gmra.mrb[0].mxu0 %v254
    %v500 = vpop.f32.mrb[0].mxu0
    %v501 = vadd.f32 0.0, %v500
    %v502 = vpop.f32.mrb[0].mxu0
    %503 = vmatprep.mubr.f32.mxu0 0.0
    %504 = vmatmul.mubr.f32.gmra.mrb[0].mxu0 %v255
    %v505 = vpop.f32.mrb[0].mxu0
    %v506 = vadd.f32 0.0, %v505
    %v507 = vpop.f32.mrb[0].mxu0
    %508 = vmatprep.mubr.f32.mxu0 0.0
    %509 = vmatmul.mubr.f32.gmra.mrb[0].mxu0 %v256
    %v510 = vpop.f32.mrb[0].mxu0
    %v511 = vadd.f32 0.0, %v510
    %v512 = vpop.f32.mrb[0].mxu0
    %513 = vmatprep.mubr.f32.mxu0 0.0
    %514 = vmatmul.mubr.f32.gmra.mrb[0].mxu0 %v257
    %v515 = vpop.f32.mrb[0].mxu0
    %v516 = vadd.f32 0.0, %v515
    %v517 = vpop.f32.mrb[0].mxu0
    %518 = vmatprep.mubr.f32.mxu0 0.0
    %519 = vmatmul.mubr.f32.gmra.mrb[0].mxu0 %v258
    %v520 = vpop.f32.mrb[0].mxu0
    %v521 = vadd.f32 0.0, %v520
    %v522 = vpop.f32.mrb[0].mxu0
    %523 = vmatprep.mubr.f32.mxu0 0.0
    %524 = vmatmul.mubr.f32.gmra.mrb[0].mxu0 %v259
    %v525 = vpop.f32.mrb[0].mxu0
    %v526 = vadd.f32 0.0, %v525
    %v527 = vpop.f32.mrb[0].mxu0
    %528 = vmatprep.mubr.f32.mxu0 0.0
    %529 = vmatmul.mubr.f32.gmra.mrb[0].mxu0 %v260
    %v530 = vpop.f32.mrb[0].mxu0
    %v531 = vadd.f32 0.0, %v530
    %v532 = vpop.f32.mrb[0].mxu0
    %533 = vmatprep.mubr.f32.mxu0 0.0
    %534 = vmatmul.mubr.f32.gmra.mrb[0].mxu0 %v261
    %v535 = vpop.f32.mrb[0].mxu0
    %v536 = vadd.f32 0.0, %v535
    %v537 = vpop.f32.mrb[0].mxu0
    %538 = vmatprep.mubr.f32.mxu0 0.0
    %539 = vmatmul.mubr.f32.gmra.mrb[0].mxu0 %v262
    %v540 = vpop.f32.mrb[0].mxu0
    %v541 = vadd.f32 0.0, %v540
    %v542 = vpop.f32.mrb[0].mxu0
    %543 = vmatprep.mubr.f32.mxu0 0.0
    %544 = vmatmul.mubr.f32.gmra.mrb[0].mxu0 %v263
    %v545 = vpop.f32.mrb[0].mxu0
    %v546 = vadd.f32 0.0, %v545
    %v547 = vpop.f32.mrb[0].mxu0
    %548 = vmatprep.mubr.f32.mxu0 0.0
    %549 = vmatmul.mubr.f32.gmra.mrb[0].mxu0 %v264
    %v550 = vpop.f32.mrb[0].mxu0
    %v551 = vadd.f32 0.0, %v550
    %v552 = vpop.f32.mrb[0].mxu0
    %553 = vmatprep.mubr.f32.mxu0 0.0
    %554 = vmatmul.mubr.f32.gmra.mrb[0].mxu0 %v265
    %v555 = vpop.f32.mrb[0].mxu0
    %v556 = vadd.f32 0.0, %v555
    %v557 = vpop.f32.mrb[0].mxu0
    %558 = vmatprep.mubr.f32.mxu0 0.0
    %559 = vmatmul.mubr.f32.gmra.mrb[0].mxu0 %v266
    %v560 = vpop.f32.mrb[0].mxu0
    %v561 = vadd.f32 0.0, %v560
    %v562 = vpop.f32.mrb[0].mxu0
    %563 = vmatprep.mubr.f32.mxu0 0.0
    %564 = vmatmul.mubr.f32.gmra.mrb[0].mxu0 %v267
    %v565 = vpop.f32.mrb[0].mxu0
    %v566 = vadd.f32 0.0, %v565
    %v567 = vpop.f32.mrb[0].mxu0
    %568 = vmatprep.mubr.f32.mxu0 0.0
    %569 = vmatmul.mubr.f32.gmra.mrb[0].mxu0 %v268
    %v570 = vpop.f32.mrb[0].mxu0
    %v571 = vadd.f32 0.0, %v570
    %v572 = vpop.f32.mrb[0].mxu0
    %573 = vmatprep.mubr.f32.mxu0 0.0
    %574 = vmatmul.mubr.f32.gmra.mrb[0].mxu0 %v269
    %v575 = vpop.f32.mrb[0].mxu0
    %v576 = vadd.f32 0.0, %v575
    %v577 = vpop.f32.mrb[0].mxu0
    %578 = vmatprep.mubr.f32.mxu0 0.0
    %579 = vmatmul.mubr.f32.gmra.mrb[0].mxu0 %v270
    %v580 = vpop.f32.mrb[0].mxu0
    %v581 = vadd.f32 0.0, %v580
    %v582 = vpop.f32.mrb[0].mxu0
    %583 = vmatprep.mubr.f32.mxu0 0.0
    %584 = vmatmul.mubr.f32.gmra.mrb[0].mxu0 %v271
    %v585 = vpop.f32.mrb[0].mxu0
    %v586 = vadd.f32 0.0, %v585
    %v587 = vpop.f32.mrb[0].mxu0
    %588 = vmatprep.mubr.f32.mxu0 0.0
    %589 = vmatmul.mubr.f32.gmra.mrb[0].mxu0 %v272
    %v590 = vpop.f32.mrb[0].mxu0
    %v591 = vadd.f32 0.0, %v590
    %v592 = vpop.f32.mrb[0].mxu0
    %593 = vmatprep.mubr.f32.mxu0 0.0
    %594 = vmatmul.mubr.f32.gmra.mrb[0].mxu0 %v273
    %v595 = vpop.f32.mrb[0].mxu0
    %v596 = vadd.f32 0.0, %v595
    %v597 = vpop.f32.mrb[0].mxu0
    %598 = vmatprep.mubr.f32.mxu0 0.0
    %599 = vmatmul.mubr.f32.gmra.mrb[0].mxu0 %v274
    %v600 = vpop.f32.mrb[0].mxu0
    %v601 = vadd.f32 0.0, %v600
    %v602 = vpop.f32.mrb[0].mxu0
    %603 = vmatprep.mubr.f32.mxu0 0.0
    %604 = vmatmul.mubr.f32.gmra.mrb[0].mxu0 %v275
    %v605 = vpop.f32.mrb[0].mxu0
    %v606 = vadd.f32 0.0, %v605
    %v607 = vpop.f32.mrb[0].mxu0
    %608 = vmatprep.mubr.f32.mxu0 0.0
    %609 = vmatmul.mubr.f32.gmra.mrb[0].mxu0 %v276
    %v610 = vpop.f32.mrb[0].mxu0
    %v611 = vadd.f32 0.0, %v610
    %v612 = vpop.f32.mrb[0].mxu0
    %613 = vmatprep.mubr.f32.mxu0 0.0
    %614 = vmatmul.mubr.f32.gmra.mrb[0].mxu0 %v277
    %v615 = vpop.f32.mrb[0].mxu0
    %v616 = vadd.f32 0.0, %v615
    %v617 = vpop.f32.mrb[0].mxu0
    %618 = vmatprep.mubr.f32.mxu0 0.0
    %619 = vmatmul.mubr.f32.gmra.mrb[0].mxu0 %v278
    %v620 = vpop.f32.mrb[0].mxu0
    %v621 = vadd.f32 0.0, %v620
    %v622 = vpop.f32.mrb[0].mxu0
    %623 = vmatprep.mubr.f32.mxu0 0.0
    %624 = vmatmul.mubr.f32.gmra.mrb[0].mxu0 %v279
    %v625 = vpop.f32.mrb[0].mxu0
    %v626 = vadd.f32 0.0, %v625
    %v627 = vpop.f32.mrb[0].mxu0
    %628 = vmatprep.mubr.f32.mxu0 0.0
    %629 = vmatmul.mubr.f32.gmra.mrb[0].mxu0 %v280
    %v630 = vpop.f32.mrb[0].mxu0
    %v631 = vadd.f32 0.0, %v630
    %v632 = vpop.f32.mrb[0].mxu0
    %633 = vmatprep.mubr.f32.mxu0 0.0
    %634 = vmatmul.mubr.f32.gmra.mrb[0].mxu0 %v281
    %v635 = vpop.f32.mrb[0].mxu0
    %v636 = vadd.f32 0.0, %v635
    %v637 = vpop.f32.mrb[0].mxu0
    %638 = vmatprep.mubr.f32.mxu0 0.0
    %639 = vmatmul.mubr.f32.gmra.mrb[0].mxu0 %v282
    %v640 = vpop.f32.mrb[0].mxu0
    %v641 = vadd.f32 0.0, %v640
    %v642 = vpop.f32.mrb[0].mxu0
    %643 = vmatprep.mubr.f32.mxu0 0.0
    %644 = vmatmul.mubr.f32.gmra.mrb[0].mxu0 %v283
    %v645 = vpop.f32.mrb[0].mxu0
    %v646 = vadd.f32 0.0, %v645
    %v647 = vpop.f32.mrb[0].mxu0
    %648 = vmatprep.mubr.f32.mxu0 0.0
    %649 = vmatmul.mubr.f32.gmra.mrb[0].mxu0 %v284
    %v650 = vpop.f32.mrb[0].mxu0
    %v651 = vadd.f32 0.0, %v650
    %v652 = vpop.f32.mrb[0].mxu0
    %653 = vmatprep.mubr.f32.mxu0 0.0
    %654 = vmatmul.mubr.f32.gmra.mrb[0].mxu0 %v285
    %v655 = vpop.f32.mrb[0].mxu0
    %v656 = vadd.f32 0.0, %v655
    %v657 = vpop.f32.mrb[0].mxu0
    %658 = vmatprep.mubr.f32.mxu0 0.0
    %659 = vmatmul.mubr.f32.gmra.mrb[0].mxu0 %v286
    %v660 = vpop.f32.mrb[0].mxu0
    %v661 = vadd.f32 0.0, %v660
    %v662 = vpop.f32.mrb[0].mxu0
    %663 = vmatprep.mubr.f32.mxu0 0.0
    %664 = vmatmul.mubr.f32.gmra.mrb[0].mxu0 %v287
    %v665 = vpop.f32.mrb[0].mxu0
    %v666 = vadd.f32 0.0, %v665
    %v667 = vpop.f32.mrb[0].mxu0
    %668 = vmatprep.mubr.f32.mxu0 0.0
    %669 = vmatmul.mubr.f32.gmra.mrb[0].mxu0 %v288
    %v670 = vpop.f32.mrb[0].mxu0
    %v671 = vadd.f32 0.0, %v670
    %v672 = vpop.f32.mrb[0].mxu0
    %673 = vmatprep.mubr.f32.mxu0 0.0
    %674 = vmatmul.mubr.f32.gmra.mrb[0].mxu0 %v289
    %v675 = vpop.f32.mrb[0].mxu0
    %v676 = vadd.f32 0.0, %v675
    %v677 = vpop.f32.mrb[0].mxu0
    %678 = vmatprep.mubr.f32.mxu0 0.0
    %679 = vmatmul.mubr.f32.gmra.mrb[0].mxu0 %v290
    %v680 = vpop.f32.mrb[0].mxu0
    %v681 = vadd.f32 0.0, %v680
    %v682 = vpop.f32.mrb[0].mxu0
    %683 = vmatprep.mubr.f32.mxu0 0.0
    %684 = vmatmul.mubr.f32.gmra.mrb[0].mxu0 %v291
    %v685 = vpop.f32.mrb[0].mxu0
    %v686 = vadd.f32 0.0, %v685
    %v687 = vpop.f32.mrb[0].mxu0
    %688 = vmatprep.mubr.f32.mxu0 0.0
    %689 = vmatmul.mubr.f32.gmra.mrb[0].mxu0 %v292
    %v690 = vpop.f32.mrb[0].mxu0
    %v691 = vadd.f32 0.0, %v690
    %v692 = vpop.f32.mrb[0].mxu0
    %693 = vmatprep.mubr.f32.mxu0 0.0
    %694 = vmatmul.mubr.f32.gmra.mrb[0].mxu0 %v293
    %v695 = vpop.f32.mrb[0].mxu0
    %v696 = vadd.f32 0.0, %v695
    %v697 = vpop.f32.mrb[0].mxu0
    %698 = vmatprep.mubr.f32.mxu0 0.0
    %699 = vmatmul.mubr.f32.gmra.mrb[0].mxu0 %v294
    %v700 = vpop.f32.mrb[0].mxu0
    %v701 = vadd.f32 0.0, %v700
    %v702 = vpop.f32.mrb[0].mxu0
    %703 = vmatprep.mubr.f32.mxu0 0.0
    %704 = vmatmul.mubr.f32.gmra.mrb[0].mxu0 %v295
    %v705 = vpop.f32.mrb[0].mxu0
    %v706 = vadd.f32 0.0, %v705
    %v707 = vpop.f32.mrb[0].mxu0
    %708 = vmatprep.mubr.f32.mxu0 0.0
    %709 = vmatmul.mubr.f32.gmra.mrb[0].mxu0 %v296
    %v710 = vpop.f32.mrb[0].mxu0
    %v711 = vadd.f32 0.0, %v710
    %v712 = vpop.f32.mrb[0].mxu0
    %713 = vmatprep.mubr.f32.mxu0 0.0
    %714 = vmatmul.mubr.f32.gmra.mrb[0].mxu0 %v297
    %v715 = vpop.f32.mrb[0].mxu0
    %v716 = vadd.f32 0.0, %v715
    %v717 = vpop.f32.mrb[0].mxu0
    %718 = vmatprep.mubr.f32.mxu0 0.0
    %719 = vmatmul.mubr.f32.gmra.mrb[0].mxu0 %v298
    %v720 = vpop.f32.mrb[0].mxu0
    %v721 = vadd.f32 0.0, %v720
    %v722 = vpop.f32.mrb[0].mxu0
    %723 = vmatprep.mubr.f32.mxu0 0.0
    %724 = vmatmul.mubr.f32.gmra.mrb[0].mxu0 %v299
    %v725 = vpop.f32.mrb[0].mxu0
    %v726 = vadd.f32 0.0, %v725
    %v727 = vpop.f32.mrb[0].mxu0
    %728 = vmatprep.mubr.f32.mxu0 0.0
    %729 = vmatmul.mubr.f32.gmra.mrb[0].mxu0 %v300
    %v730 = vpop.f32.mrb[0].mxu0
    %v731 = vadd.f32 0.0, %v730
    %v732 = vpop.f32.mrb[0].mxu0
    %733 = vmatprep.mubr.f32.mxu0 0.0
    %734 = vmatmul.mubr.f32.gmra.mrb[0].mxu0 %v301
    %v735 = vpop.f32.mrb[0].mxu0
    %v736 = vadd.f32 0.0, %v735
    %v737 = vpop.f32.mrb[0].mxu0
    %738 = vmatprep.mubr.f32.mxu0 0.0
    %739 = vmatmul.mubr.f32.gmra.mrb[0].mxu0 %v302
    %v740 = vpop.f32.mrb[0].mxu0
    %v741 = vadd.f32 0.0, %v740
    %v742 = vpop.f32.mrb[0].mxu0
    %743 = vmatprep.mubr.f32.mxu0 0.0
    %744 = vmatmul.mubr.f32.gmra.mrb[0].mxu0 %v303
    %v745 = vpop.f32.mrb[0].mxu0
    %v746 = vadd.f32 0.0, %v745
    %v747 = vpop.f32.mrb[0].mxu0
    %748 = vmatprep.mubr.f32.mxu0 0.0
    %749 = vmatmul.mubr.f32.gmra.mrb[0].mxu0 %v304
    %v750 = vpop.f32.mrb[0].mxu0
    %v751 = vadd.f32 0.0, %v750
    %v752 = vpop.f32.mrb[0].mxu0
    %753 = vmatprep.mubr.f32.mxu0 0.0
    %754 = vmatmul.mubr.f32.gmra.mrb[0].mxu0 %v305
    %v755 = vpop.f32.mrb[0].mxu0
    %v756 = vadd.f32 0.0, %v755
    %v757 = vpop.f32.mrb[0].mxu0
    %758 = vmatprep.mubr.f32.mxu0 0.0
    %759 = vmatmul.mubr.f32.gmra.mrb[0].mxu0 %v306
    %v760 = vpop.f32.mrb[0].mxu0
    %v761 = vadd.f32 0.0, %v760
    %v762 = vpop.f32.mrb[0].mxu0
    %763 = vmatprep.mubr.f32.mxu0 0.0
    %764 = vmatmul.mubr.f32.gmra.mrb[0].mxu0 %v307
    %v765 = vpop.f32.mrb[0].mxu0
    %v766 = vadd.f32 0.0, %v765
    %v767 = vpop.f32.mrb[0].mxu0
    %768 = vmatprep.mubr.f32.mxu0 0.0
    %769 = vmatmul.mubr.f32.gmra.mrb[0].mxu0 %v308
    %v770 = vpop.f32.mrb[0].mxu0
    %v771 = vadd.f32 0.0, %v770
    %v772 = vpop.f32.mrb[0].mxu0
    %773 = vmatprep.mubr.f32.mxu0 0.0
    %774 = vmatmul.mubr.f32.gmra.mrb[0].mxu0 %v309
    %v775 = vpop.f32.mrb[0].mxu0
    %v776 = vadd.f32 0.0, %v775
    %v777 = vpop.f32.mrb[0].mxu0
    %778 = vmatprep.mubr.f32.mxu0 0.0
    %779 = vmatmul.mubr.f32.gmra.mrb[0].mxu0 %v310
    %v780 = vpop.f32.mrb[0].mxu0
    %v781 = vadd.f32 0.0, %v780
    %v782 = vpop.f32.mrb[0].mxu0
    %783 = vmatprep.mubr.f32.mxu0 0.0
    %784 = vmatmul.mubr.f32.gmra.mrb[0].mxu0 %v311
    %v785 = vpop.f32.mrb[0].mxu0
    %v786 = vadd.f32 0.0, %v785
    %v787 = vpop.f32.mrb[0].mxu0
    %788 = vmatprep.mubr.f32.mxu0 0.0
    %789 = vmatmul.mubr.f32.gmra.mrb[0].mxu0 %v312
    %v790 = vpop.f32.mrb[0].mxu0
    %v791 = vadd.f32 0.0, %v790
    %v792 = vpop.f32.mrb[0].mxu0
    %793 = vmatprep.mubr.f32.mxu0 0.0
    %794 = vmatmul.mubr.f32.gmra.mrb[0].mxu0 %v313
    %v795 = vpop.f32.mrb[0].mxu0
    %v796 = vadd.f32 0.0, %v795
    %v797 = vpop.f32.mrb[0].mxu0
    %798 = vmatprep.mubr.f32.mxu0 0.0
    %799 = vmatmul.mubr.f32.gmra.mrb[0].mxu0 %v314
    %v800 = vpop.f32.mrb[0].mxu0
    %v801 = vadd.f32 0.0, %v800
    %v802 = vpop.f32.mrb[0].mxu0
    %803 = vmatprep.mubr.f32.mxu0 0.0
    %804 = vmatmul.mubr.f32.gmra.mrb[0].mxu0 %v315
    %v805 = vpop.f32.mrb[0].mxu0
    %v806 = vadd.f32 0.0, %v805
    %v807 = vpop.f32.mrb[0].mxu0
    %808 = vmatprep.mubr.f32.mxu0 0.0
    %809 = vmatmul.mubr.f32.gmra.mrb[0].mxu0 %v316
    %v810 = vpop.f32.mrb[0].mxu0
    %v811 = vadd.f32 0.0, %v810
    %v812 = vpop.f32.mrb[0].mxu0
    %813 = vmatprep.mubr.f32.mxu0 0.0
    %814 = vmatmul.mubr.f32.gmra.mrb[0].mxu0 %v317
    %v815 = vpop.f32.mrb[0].mxu0
    %v816 = vadd.f32 0.0, %v815
    %v817 = vpop.f32.mrb[0].mxu0
    %818 = vmatprep.mubr.f32.mxu0 0.0
    %819 = vmatmul.mubr.f32.gmra.mrb[0].mxu0 %v318
    %v820 = vpop.f32.mrb[0].mxu0
    %v821 = vadd.f32 0.0, %v820
    %v822 = vpop.f32.mrb[0].mxu0
    %823 = vmatprep.mubr.f32.mxu0 0.0
    %824 = vmatmul.mubr.f32.gmra.mrb[0].mxu0 %v319
    %v825 = vpop.f32.mrb[0].mxu0
    %v826 = vadd.f32 0.0, %v825
    %v827 = vpop.f32.mrb[0].mxu0
    %828 = vmatprep.mubr.f32.mxu0 0.0
    %829 = vmatmul.mubr.f32.gmra.mrb[0].mxu0 %v320
    %v830 = vpop.f32.mrb[0].mxu0
    %v831 = vadd.f32 0.0, %v830
    %v832 = vpop.f32.mrb[0].mxu0
    %833 = vmatprep.mubr.f32.mxu0 0.0
    %834 = vmatmul.mubr.f32.gmra.mrb[0].mxu0 %v321
    %v835 = vpop.f32.mrb[0].mxu0
    %v836 = vadd.f32 0.0, %v835
    %v837 = vpop.f32.mrb[0].mxu0
    %838 = vmatprep.mubr.f32.mxu0 0.0
    %839 = vmatmul.mubr.f32.gmra.mrb[0].mxu0 %v322
    %v840 = vpop.f32.mrb[0].mxu0
    %v841 = vadd.f32 0.0, %v840
    %v842 = vpop.f32.mrb[0].mxu0
    %843 = vmatprep.mubr.f32.mxu0 0.0
    %844 = vmatmul.mubr.f32.gmra.mrb[0].mxu0 %v323
    %v845 = vpop.f32.mrb[0].mxu0
    %v846 = vadd.f32 0.0, %v845
    %v847 = vpop.f32.mrb[0].mxu0
    %848 = vmatprep.mubr.f32.mxu0 0.0
    %849 = vmatmul.mubr.f32.gmra.mrb[0].mxu0 %v324
    %v850 = vpop.f32.mrb[0].mxu0
    %v851 = vadd.f32 0.0, %v850
    %v852 = vpop.f32.mrb[0].mxu0
    %853 = vmatprep.mubr.f32.mxu0 0.0
    %854 = vmatmul.mubr.f32.gmra.mrb[0].mxu0 %v325
    %v855 = vpop.f32.mrb[0].mxu0
    %v856 = vadd.f32 0.0, %v855
    %v857 = vpop.f32.mrb[0].mxu0
    %858 = vmatprep.mubr.f32.mxu0 0.0
    %859 = vmatmul.mubr.f32.gmra.mrb[0].mxu0 %v326
    %v860 = vpop.f32.mrb[0].mxu0
    %v861 = vadd.f32 0.0, %v860
    %v862 = vpop.f32.mrb[0].mxu0
    %863 = vmatprep.mubr.f32.mxu0 0.0
    %864 = vmatmul.mubr.f32.gmra.mrb[0].mxu0 %v327
    %v865 = vpop.f32.mrb[0].mxu0
    %v866 = vadd.f32 0.0, %v865
    %v867 = vpop.f32.mrb[0].mxu0
    %868 = vmatprep.mubr.f32.mxu0 0.0
    %869 = vmatmul.mubr.f32.gmra.mrb[0].mxu0 %v328
    %v870 = vpop.f32.mrb[0].mxu0
    %v871 = vadd.f32 0.0, %v870
    %v872 = vpop.f32.mrb[0].mxu0
    %873 = vmatprep.mubr.f32.mxu0 0.0
    %874 = vmatmul.mubr.f32.gmra.mrb[0].mxu0 %v329
    %v875 = vpop.f32.mrb[0].mxu0
    %v876 = vadd.f32 0.0, %v875
    %v877 = vpop.f32.mrb[0].mxu0
    %878 = vmatprep.mubr.f32.mxu0 0.0
    %879 = vmatmul.mubr.f32.gmra.mrb[0].mxu0 %v330
    %v880 = vpop.f32.mrb[0].mxu0
    %v881 = vadd.f32 0.0, %v880
    %v882 = vpop.f32.mrb[0].mxu0
    %883 = vmatprep.mubr.f32.mxu0 0.0
    %884 = vmatmul.mubr.f32.gmra.mrb[0].mxu0 %v331
    %v885 = vpop.f32.mrb[0].mxu0
    %v886 = vadd.f32 0.0, %v885
    %v887 = vpop.f32.mrb[0].mxu0
    %888 = vmatprep.mubr.f32.mxu0 0.0
    %889 = vmatmul.mubr.f32.gmra.mrb[0].mxu0 %v332
    %v890 = vpop.f32.mrb[0].mxu0
    %v891 = vadd.f32 0.0, %v890
    %v892 = vpop.f32.mrb[0].mxu0
    %893 = vmatprep.mubr.f32.mxu0 0.0
    %894 = vmatmul.mubr.f32.gmra.mrb[0].mxu0 %v333
    %v895 = vpop.f32.mrb[0].mxu0
    %v896 = vadd.f32 0.0, %v895
    %v897 = vpop.f32.mrb[0].mxu0
    %898 = vmatprep.mubr.f32.mxu0 0.0
    %899 = vmatmul.mubr.f32.gmra.mrb[0].mxu0 %v334
    %v900 = vpop.f32.mrb[0].mxu0
    %v901 = vadd.f32 0.0, %v900
    %v902 = vpop.f32.mrb[0].mxu0
    %903 = vmatprep.mubr.f32.mxu0 0.0
    %904 = vmatmul.mubr.f32.gmra.mrb[0].mxu0 %v335
    %v905 = vpop.f32.mrb[0].mxu0
    %v906 = vadd.f32 0.0, %v905
    %v907 = vpop.f32.mrb[0].mxu0
    %908 = vmatprep.mubr.f32.mxu0 0.0
    %909 = vmatmul.mubr.f32.gmra.mrb[0].mxu0 %v336
    %v910 = vpop.f32.mrb[0].mxu0
    %v911 = vadd.f32 0.0, %v910
    %v912 = vpop.f32.mrb[0].mxu0
    %913 = vmatprep.mubr.f32.mxu0 0.0
    %914 = vmatmul.mubr.f32.gmra.mrb[0].mxu0 %v337
    %v915 = vpop.f32.mrb[0].mxu0
    %v916 = vadd.f32 0.0, %v915
    %v917 = vpop.f32.mrb[0].mxu0
    %918 = vmatprep.mubr.f32.mxu0 0.0
    %919 = vmatmul.mubr.f32.gmra.mrb[0].mxu0 %v338
    %v920 = vpop.f32.mrb[0].mxu0
    %v921 = vadd.f32 0.0, %v920
    %v922 = vpop.f32.mrb[0].mxu0
    %923 = vmatprep.mubr.f32.mxu0 0.0
    %924 = vmatmul.mubr.f32.gmra.mrb[0].mxu0 %v339
    %v925 = vpop.f32.mrb[0].mxu0
    %v926 = vadd.f32 0.0, %v925
    %v927 = vpop.f32.mrb[0].mxu0
    %928 = vmatprep.mubr.f32.mxu0 0.0
    %929 = vmatmul.mubr.f32.gmra.mrb[0].mxu0 %v340
    %v930 = vpop.f32.mrb[0].mxu0
    %v931 = vadd.f32 0.0, %v930
    %v932 = vpop.f32.mrb[0].mxu0
    %933 = vmatprep.mubr.f32.mxu0 0.0
    %934 = vmatmul.mubr.f32.gmra.mrb[0].mxu0 %v341
    %v935 = vpop.f32.mrb[0].mxu0
    %v936 = vadd.f32 0.0, %v935
    %v937 = vpop.f32.mrb[0].mxu0
    %938 = vmatprep.mubr.f32.mxu0 0.0
    %939 = vmatmul.mubr.f32.gmra.mrb[0].mxu0 %v342
    %v940 = vpop.f32.mrb[0].mxu0
    %v941 = vadd.f32 0.0, %v940
    %v942 = vpop.f32.mrb[0].mxu0
    %943 = vmatprep.mubr.f32.mxu0 0.0
    %944 = vmatmul.mubr.f32.gmra.mrb[0].mxu0 %v343
    %v945 = vpop.f32.mrb[0].mxu0
    %v946 = vadd.f32 0.0, %v945
    %v947 = vpop.f32.mrb[0].mxu0
    %948 = vmatprep.mubr.f32.mxu0 0.0
    %949 = vmatmul.mubr.f32.gmra.mrb[0].mxu0 %v344
    %v950 = vpop.f32.mrb[0].mxu0
    %v951 = vadd.f32 0.0, %v950
    %v952 = vpop.f32.mrb[0].mxu0
    %953 = vmatprep.mubr.f32.mxu0 0.0
    %954 = vmatmul.mubr.f32.gmra.mrb[0].mxu0 %v345
    %v955 = vpop.f32.mrb[0].mxu0
    %v956 = vadd.f32 0.0, %v955
    %v957 = vpop.f32.mrb[0].mxu0
    %958 = vmatprep.mubr.f32.mxu0 0.0
    %959 = vmatmul.mubr.f32.gmra.mrb[0].mxu0 %v346
    %v960 = vpop.f32.mrb[0].mxu0
    %v961 = vadd.f32 0.0, %v960
    %v962 = vpop.f32.mrb[0].mxu0
    %963 = vmatprep.mubr.f32.mxu0 0.0
    %964 = vmatmul.mubr.f32.gmra.mrb[0].mxu0 %v347
    %v965 = vpop.f32.mrb[0].mxu0
    %v966 = vadd.f32 0.0, %v965
    %v967 = vpop.f32.mrb[0].mxu0
    %968 = vmatprep.mubr.f32.mxu0 0.0
    %969 = vmatmul.mubr.f32.gmra.mrb[0].mxu0 %v348
    %v970 = vpop.f32.mrb[0].mxu0
    %v971 = vadd.f32 0.0, %v970
    %v972 = vpop.f32.mrb[0].mxu0
    %973 = vmatprep.mubr.f32.mxu0 0.0
    %974 = vmatmul.mubr.f32.gmra.mrb[0].mxu0 %v349
    %v975 = vpop.f32.mrb[0].mxu0
    %v976 = vadd.f32 0.0, %v975
    %v977 = vpop.f32.mrb[0].mxu0
    %978 = vmatprep.mubr.f32.mxu0 0.0
    %979 = vmatmul.mubr.f32.gmra.mrb[0].mxu0 %v350
    %v980 = vpop.f32.mrb[0].mxu0
    %v981 = vadd.f32 0.0, %v980
    %v982 = vpop.f32.mrb[0].mxu0
    %983 = vmatprep.mubr.f32.mxu0 0.0
    %984 = vmatmul.mubr.f32.gmra.mrb[0].mxu0 %v351
    %v985 = vpop.f32.mrb[0].mxu0
    %v986 = vadd.f32 0.0, %v985
    %v987 = vpop.f32.mrb[0].mxu0
    %988 = vmatprep.mubr.f32.mxu0 0.0
    %989 = vmatmul.mubr.f32.gmra.mrb[0].mxu0 %v352
    %v990 = vpop.f32.mrb[0].mxu0
    %v991 = vadd.f32 0.0, %v990
    %v992 = vpop.f32.mrb[0].mxu0
    %993 = vmatprep.mubr.f32.mxu0 0.0
    %994 = vmatmul.mubr.f32.gmra.mrb[0].mxu0 %v353
    %v995 = vpop.f32.mrb[0].mxu0
    %v996 = vadd.f32 0.0, %v995
    %v997 = vpop.f32.mrb[0].mxu0
    %998 = vmatprep.mubr.f32.mxu0 0.0
    %999 = vmatmul.mubr.f32.gmra.mrb[0].mxu0 %v354
    %v1000 = vpop.f32.mrb[0].mxu0
    %v1001 = vadd.f32 0.0, %v1000
    %v1002 = vpop.f32.mrb[0].mxu0
    %1003 = vmatprep.mubr.f32.mxu0 0.0
    %1004 = vmatmul.mubr.f32.gmra.mrb[0].mxu0 %v355
    %v1005 = vpop.f32.mrb[0].mxu0
    %v1006 = vadd.f32 0.0, %v1005
    %v1007 = vpop.f32.mrb[0].mxu0
    %1008 = vmatprep.mubr.f32.mxu0 0.0
    %1009 = vmatmul.mubr.f32.gmra.mrb[0].mxu0 %v356
    %v1010 = vpop.f32.mrb[0].mxu0
    %v1011 = vadd.f32 0.0, %v1010
    %v1012 = vpop.f32.mrb[0].mxu0
    %1013 = vmatprep.mubr.f32.mxu0 0.0
    %1014 = vmatmul.mubr.f32.gmra.mrb[0].mxu0 %v357
    %v1015 = vpop.f32.mrb[0].mxu0
    %v1016 = vadd.f32 0.0, %v1015
    %v1017 = vpop.f32.mrb[0].mxu0
    %1018 = vmatprep.mubr.f32.mxu0 0.0
    %1019 = vmatmul.mubr.f32.gmra.mrb[0].mxu0 %v358
    %v1020 = vpop.f32.mrb[0].mxu0
    %v1021 = vadd.f32 0.0, %v1020
    %v1022 = vpop.f32.mrb[0].mxu0
    %1023 = vmatprep.mubr.f32.mxu0 0.0
    %1024 = vmatmul.mubr.f32.gmra.mrb[0].mxu0 %v359
    %v1025 = vpop.f32.mrb[0].mxu0
    %v1026 = vadd.f32 0.0, %v1025
    %v1027 = vpop.f32.mrb[0].mxu0
    %1028 = vmatprep.mubr.f32.mxu0 0.0
    %1029 = vmatmul.mubr.f32.gmra.mrb[0].mxu0 %v360
    %v1030 = vpop.f32.mrb[0].mxu0
    %v1031 = vadd.f32 0.0, %v1030
    %v1032 = vpop.f32.mrb[0].mxu0
    %1033 = vmatprep.mubr.f32.mxu0 0.0
    %1034 = vmatmul.mubr.f32.gmra.mrb[0].mxu0 %v361
    %v1035 = vpop.f32.mrb[0].mxu0
    %v1036 = vadd.f32 0.0, %v1035
    %v1037 = vpop.f32.mrb[0].mxu0
    %1038 = vmatprep.mubr.f32.mxu0 0.0
    %1039 = vmatmul.mubr.f32.gmra.mrb[0].mxu0 %v362
    %v1040 = vpop.f32.mrb[0].mxu0
    %v1041 = vadd.f32 0.0, %v1040
    %v1042 = vpop.f32.mrb[0].mxu0
    %1043 = vmatprep.mubr.f32.mxu0 0.0
    %1044 = vmatmul.mubr.f32.gmra.mrb[0].mxu0 %v363
    %v1045 = vpop.f32.mrb[0].mxu0
    %v1046 = vadd.f32 0.0, %v1045
    %v1047 = vpop.f32.mrb[0].mxu0
    %1048 = vmatprep.mubr.f32.mxu0 0.0
    %1049 = vmatmul.mubr.f32.gmra.mrb[0].mxu0 %v364
    %v1050 = vpop.f32.mrb[0].mxu0
    %v1051 = vadd.f32 0.0, %v1050
    %v1052 = vpop.f32.mrb[0].mxu0
    %1053 = vmatprep.mubr.f32.mxu0 0.0
    %1054 = vmatmul.mubr.f32.gmra.mrb[0].mxu0 %v365
    %v1055 = vpop.f32.mrb[0].mxu0
    %v1056 = vadd.f32 0.0, %v1055
    %v1057 = vpop.f32.mrb[0].mxu0
    %1058 = vmatprep.mubr.f32.mxu0 0.0
    %1059 = vmatmul.mubr.f32.gmra.mrb[0].mxu0 %v366
    %v1060 = vpop.f32.mrb[0].mxu0
    %v1061 = vadd.f32 0.0, %v1060
    %v1062 = vpop.f32.mrb[0].mxu0
    %1063 = vmatprep.mubr.f32.mxu0 0.0
    %1064 = vmatmul.mubr.f32.gmra.mrb[0].mxu0 %v367
    %v1065 = vpop.f32.mrb[0].mxu0
    %v1066 = vadd.f32 0.0, %v1065
    %v1067 = vpop.f32.mrb[0].mxu0
    %1068 = vmatprep.mubr.f32.mxu0 0.0
    %1069 = vmatmul.mubr.f32.gmra.mrb[0].mxu0 %v368
    %v1070 = vpop.f32.mrb[0].mxu0
    %v1071 = vadd.f32 0.0, %v1070
    %v1072 = vpop.f32.mrb[0].mxu0
    %1073 = vdwg.mxu0
    %1074 = vst [vmem:[#allocation5] sm:$0xff] %v436
    %1075 = vst [vmem:[#allocation5 + $0x8] sm:$0xff] %v441
    %1076 = vst [vmem:[#allocation5 + $0x10] sm:$0xff] %v446
    %1077 = vst [vmem:[#allocation5 + $0x18] sm:$0xff] %v451
    %1078 = vst [vmem:[#allocation5 + $0x20] sm:$0xff] %v456
    %1079 = vst [vmem:[#allocation5 + $0x28] sm:$0xff] %v461
    %1080 = vst [vmem:[#allocation5 + $0x30] sm:$0xff] %v466
    %1081 = vst [vmem:[#allocation5 + $0x38] sm:$0xff] %v471
    %1082 = vst [vmem:[#allocation5 + $0x40] sm:$0xff] %v476
    %1083 = vst [vmem:[#allocation5 + $0x48] sm:$0xff] %v481
    %1084 = vst [vmem:[#allocation5 + $0x50] sm:$0xff] %v486
    %1085 = vst [vmem:[#allocation5 + $0x58] sm:$0xff] %v491
    %1086 = vst [vmem:[#allocation5 + $0x60] sm:$0xff] %v496
    %1087 = vst [vmem:[#allocation5 + $0x68] sm:$0xff] %v501
    %1088 = vst [vmem:[#allocation5 + $0x70] sm:$0xff] %v506
    %1089 = vst [vmem:[#allocation5 + $0x78] sm:$0xff] %v511
    %1090 = vst [vmem:[#allocation5 + $0x80] sm:$0xff] %v516
    %1091 = vst [vmem:[#allocation5 + $0x88] sm:$0xff] %v521
    %1092 = vst [vmem:[#allocation5 + $0x90] sm:$0xff] %v526
    %1093 = vst [vmem:[#allocation5 + $0x98] sm:$0xff] %v531
    %1094 = vst [vmem:[#allocation5 + $0xa0] sm:$0xff] %v536
    %1095 = vst [vmem:[#allocation5 + $0xa8] sm:$0xff] %v541
    %1096 = vst [vmem:[#allocation5 + $0xb0] sm:$0xff] %v546
    %1097 = vst [vmem:[#allocation5 + $0xb8] sm:$0xff] %v551
    %1098 = vst [vmem:[#allocation5 + $0xc0] sm:$0xff] %v556
    %1099 = vst [vmem:[#allocation5 + $0xc8] sm:$0xff] %v561
    %1100 = vst [vmem:[#allocation5 + $0xd0] sm:$0xff] %v566
    %1101 = vst [vmem:[#allocation5 + $0xd8] sm:$0xff] %v571
    %1102 = vst [vmem:[#allocation5 + $0xe0] sm:$0xff] %v576
    %1103 = vst [vmem:[#allocation5 + $0xe8] sm:$0xff] %v581
    %1104 = vst [vmem:[#allocation5 + $0xf0] sm:$0xff] %v586
    %1105 = vst [vmem:[#allocation5 + $0xf8] sm:$0xff] %v591
    %1106 = vst [vmem:[#allocation5 + $0x100] sm:$0xff] %v596
    %1107 = vst [vmem:[#allocation5 + $0x108] sm:$0xff] %v601
    %1108 = vst [vmem:[#allocation5 + $0x110] sm:$0xff] %v606
    %1109 = vst [vmem:[#allocation5 + $0x118] sm:$0xff] %v611
    %1110 = vst [vmem:[#allocation5 + $0x120] sm:$0xff] %v616
    %1111 = vst [vmem:[#allocation5 + $0x128] sm:$0xff] %v621
    %1112 = vst [vmem:[#allocation5 + $0x130] sm:$0xff] %v626
    %1113 = vst [vmem:[#allocation5 + $0x138] sm:$0xff] %v631
    %1114 = vst [vmem:[#allocation5 + $0x140] sm:$0xff] %v636
    %1115 = vst [vmem:[#allocation5 + $0x148] sm:$0xff] %v641
    %1116 = vst [vmem:[#allocation5 + $0x150] sm:$0xff] %v646
    %1117 = vst [vmem:[#allocation5 + $0x158] sm:$0xff] %v651
    %1118 = vst [vmem:[#allocation5 + $0x160] sm:$0xff] %v656
    %1119 = vst [vmem:[#allocation5 + $0x168] sm:$0xff] %v661
    %1120 = vst [vmem:[#allocation5 + $0x170] sm:$0xff] %v666
    %1121 = vst [vmem:[#allocation5 + $0x178] sm:$0xff] %v671
    %1122 = vst [vmem:[#allocation5 + $0x180] sm:$0xff] %v676
    %1123 = vst [vmem:[#allocation5 + $0x188] sm:$0xff] %v681
    %1124 = vst [vmem:[#allocation5 + $0x190] sm:$0xff] %v686
    %1125 = vst [vmem:[#allocation5 + $0x198] sm:$0xff] %v691
    %1126 = vst [vmem:[#allocation5 + $0x1a0] sm:$0xff] %v696
    %1127 = vst [vmem:[#allocation5 + $0x1a8] sm:$0xff] %v701
    %1128 = vst [vmem:[#allocation5 + $0x1b0] sm:$0xff] %v706
    %1129 = vst [vmem:[#allocation5 + $0x1b8] sm:$0xff] %v711
    %1130 = vst [vmem:[#allocation5 + $0x1c0] sm:$0xff] %v716
    %1131 = vst [vmem:[#allocation5 + $0x1c8] sm:$0xff] %v721
    %1132 = vst [vmem:[#allocation5 + $0x1d0] sm:$0xff] %v726
    %1133 = vst [vmem:[#allocation5 + $0x1d8] sm:$0xff] %v731
    %1134 = vst [vmem:[#allocation5 + $0x1e0] sm:$0xff] %v736
    %1135 = vst [vmem:[#allocation5 + $0x1e8] sm:$0xff] %v741
    %1136 = vst [vmem:[#allocation5 + $0x1f0] sm:$0xff] %v746
    %1137 = vst [vmem:[#allocation5 + $0x1f8] sm:$0xff] %v751
    %1138 = vst [vmem:[#allocation5 + $0x200] sm:$0xff] %v756
    %1139 = vst [vmem:[#allocation5 + $0x208] sm:$0xff] %v761
    %1140 = vst [vmem:[#allocation5 + $0x210] sm:$0xff] %v766
    %1141 = vst [vmem:[#allocation5 + $0x218] sm:$0xff] %v771
    %1142 = vst [vmem:[#allocation5 + $0x220] sm:$0xff] %v776
    %1143 = vst [vmem:[#allocation5 + $0x228] sm:$0xff] %v781
    %1144 = vst [vmem:[#allocation5 + $0x230] sm:$0xff] %v786
    %1145 = vst [vmem:[#allocation5 + $0x238] sm:$0xff] %v791
    %1146 = vst [vmem:[#allocation5 + $0x240] sm:$0xff] %v796
    %1147 = vst [vmem:[#allocation5 + $0x248] sm:$0xff] %v801
    %1148 = vst [vmem:[#allocation5 + $0x250] sm:$0xff] %v806
    %1149 = vst [vmem:[#allocation5 + $0x258] sm:$0xff] %v811
    %1150 = vst [vmem:[#allocation5 + $0x260] sm:$0xff] %v816
    %1151 = vst [vmem:[#allocation5 + $0x268] sm:$0xff] %v821
    %1152 = vst [vmem:[#allocation5 + $0x270] sm:$0xff] %v826
    %1153 = vst [vmem:[#allocation5 + $0x278] sm:$0xff] %v831
    %1154 = vst [vmem:[#allocation5 + $0x280] sm:$0xff] %v836
    %1155 = vst [vmem:[#allocation5 + $0x288] sm:$0xff] %v841
    %1156 = vst [vmem:[#allocation5 + $0x290] sm:$0xff] %v846
    %1157 = vst [vmem:[#allocation5 + $0x298] sm:$0xff] %v851
    %1158 = vst [vmem:[#allocation5 + $0x2a0] sm:$0xff] %v856
    %1159 = vst [vmem:[#allocation5 + $0x2a8] sm:$0xff] %v861
    %1160 = vst [vmem:[#allocation5 + $0x2b0] sm:$0xff] %v866
    %1161 = vst [vmem:[#allocation5 + $0x2b8] sm:$0xff] %v871
    %1162 = vst [vmem:[#allocation5 + $0x2c0] sm:$0xff] %v876
    %1163 = vst [vmem:[#allocation5 + $0x2c8] sm:$0xff] %v881
    %1164 = vst [vmem:[#allocation5 + $0x2d0] sm:$0xff] %v886
    %1165 = vst [vmem:[#allocation5 + $0x2d8] sm:$0xff] %v891
    %1166 = vst [vmem:[#allocation5 + $0x2e0] sm:$0xff] %v896
    %1167 = vst [vmem:[#allocation5 + $0x2e8] sm:$0xff] %v901
    %1168 = vst [vmem:[#allocation5 + $0x2f0] sm:$0xff] %v906
    %1169 = vst [vmem:[#allocation5 + $0x2f8] sm:$0xff] %v911
    %1170 = vst [vmem:[#allocation5 + $0x300] sm:$0xff] %v916
    %1171 = vst [vmem:[#allocation5 + $0x308] sm:$0xff] %v921
    %1172 = vst [vmem:[#allocation5 + $0x310] sm:$0xff] %v926
    %1173 = vst [vmem:[#allocation5 + $0x318] sm:$0xff] %v931
    %1174 = vst [vmem:[#allocation5 + $0x320] sm:$0xff] %v936
    %1175 = vst [vmem:[#allocation5 + $0x328] sm:$0xff] %v941
    %1176 = vst [vmem:[#allocation5 + $0x330] sm:$0xff] %v946
    %1177 = vst [vmem:[#allocation5 + $0x338] sm:$0xff] %v951
    %1178 = vst [vmem:[#allocation5 + $0x340] sm:$0xff] %v956
    %1179 = vst [vmem:[#allocation5 + $0x348] sm:$0xff] %v961
    %1180 = vst [vmem:[#allocation5 + $0x350] sm:$0xff] %v966
    %1181 = vst [vmem:[#allocation5 + $0x358] sm:$0xff] %v971
    %1182 = vst [vmem:[#allocation5 + $0x360] sm:$0xff] %v976
    %1183 = vst [vmem:[#allocation5 + $0x368] sm:$0xff] %v981
    %1184 = vst [vmem:[#allocation5 + $0x370] sm:$0xff] %v986
    %1185 = vst [vmem:[#allocation5 + $0x378] sm:$0xff] %v991
    %1186 = vst [vmem:[#allocation5 + $0x380] sm:$0xff] %v996
    %1187 = vst [vmem:[#allocation5 + $0x388] sm:$0xff] %v1001
    %1188 = vst [vmem:[#allocation5 + $0x390] sm:$0xff] %v1006
    %1189 = vst [vmem:[#allocation5 + $0x398] sm:$0xff] %v1011
    %1190 = vst [vmem:[#allocation5 + $0x3a0] sm:$0xff] %v1016
    %1191 = vst [vmem:[#allocation5 + $0x3a8] sm:$0xff] %v1021
    %1192 = vst [vmem:[#allocation5 + $0x3b0] sm:$0xff] %v1026
    %1193 = vst [vmem:[#allocation5 + $0x3b8] sm:$0xff] %v1031
    %1194 = vst [vmem:[#allocation5 + $0x3c0] sm:$0xff] %v1036
    %1195 = vst [vmem:[#allocation5 + $0x3c8] sm:$0xff] %v1041
    %1196 = vst [vmem:[#allocation5 + $0x3d0] sm:$0xff] %v1046
    %1197 = vst [vmem:[#allocation5 + $0x3d8] sm:$0xff] %v1051
    %1198 = vst [vmem:[#allocation5 + $0x3e0] sm:$0xff] %v1056
    %1199 = vst [vmem:[#allocation5 + $0x3e8] sm:$0xff] %v1061
    %1200 = vst [vmem:[#allocation5 + $0x3f0] sm:$0xff] %v1066
    %1201 = vst [vmem:[#allocation5 + $0x3f8] sm:$0xff] %v1071
    // Predicated region
    $region18: #{tpu_custom_call.1} parent=1 // pred_check
      _
    $region19: #{tpu_custom_call.1} parent=1 // pred_check_branch
      %1203 = sbr.rel (0) target = $region21
    $region20: #{tpu_custom_call.1} parent=1 // pred_region
      %s1205 = ssub.s32 16384, 16384
      %1206 = vsyncadd [#allocation4], %s1205
      %s1207 = sshll.u32 [#allocation5], 4
      %s1208 = int_to_ptr.vmem [resolvable:$true] %s1207
      %1213 = dma.vmem_to_hbm [thread:$0]  %s1208, 16384, %s3, [#allocation4], 128, 128, 8
    $region21: #{tpu_custom_call.1} parent=1 // pred_fallthru
      _
    // Predicated region
    $region22: #{tpu_custom_call.1} parent=1 // pred_check
      _
    $region23: #{tpu_custom_call.1} parent=1 // pred_check_branch
      %1215 = sbr.rel (0) target = $region25
    $region24: #{tpu_custom_call.1} parent=1 // pred_region
      %1216 = dma.done [#allocation4], 16384
    $region25: #{tpu_custom_call.1} parent=1 // pred_fallthru
      _
    %1217 = vsyncpa [#allocation3], 1
    %1218 = vsyncpa [#allocation4], 1

</llo_original>
